<compile_context>
chip_gen: v7x
topology: tpu7x:2x2x1
jax: 0.10.0
libtpu: 0.0.40
codegen_flags: <defaults>
</compile_context>

<pallas_src>
import jax
import jax.numpy as jnp
from jax.experimental import pallas as pl
from jax.experimental.pallas import tpu as pltpu


def _round_up(x, m):
    return ((x + m - 1) // m) * m


def mlp_norm_kernel(x_ref, w1_ref, w2_ref, o_ref, wh_ref):
    # Grid: (i = batch tile, j = output-column tile); j is the inner axis, so
    # the hidden activation for this batch tile is computed once at j == 0 and
    # reused (from VMEM scratch) for all output-column tiles.
    @pl.when(pl.program_id(1) == 0)
    def _():
        wh = jnp.dot(x_ref[...], w1_ref[...],
                     preferred_element_type=jnp.float32)
        wh = jnp.maximum(wh, 0.0)                 # ReLU on the f32 accumulator
        wh_ref[...] = wh.astype(wh_ref.dtype)

    out = jnp.dot(wh_ref[...], w2_ref[...],
                  preferred_element_type=jnp.float32)
    o_ref[...] = out.astype(o_ref.dtype)


def mlp_norm_forward(features, w1, w2, *, block_m=256, block_n=512,
                     compute_dtype=jnp.bfloat16):
    """MLP_norm.forward: relu(features @ W1.T) @ W2.T  (no biases).

    features: [B, dim_in];  W1: [dim_out, dim_in];  W2: [dim_out, dim_out]
    (PyTorch nn.Linear weight convention).  Returns [B, dim_out] in
    features.dtype.
    """
    B, dim_in = features.shape
    dim_out = w1.shape[0]
    assert w1.shape == (dim_out, dim_in)
    assert w2.shape == (dim_out, dim_out)
    out_dtype = features.dtype
    cdt = jnp.dtype(compute_dtype)

    # Pad matmul dims to multiples of 128 (lane-dense, full MXU width) and the
    # batch tile to a multiple of 8 (sublanes).  Zero padding is exact.
    K = _round_up(dim_in, 128)           # contraction dim of matmul 1
    H = _round_up(dim_out, 128)          # hidden dim (= K of matmul 2)
    N = H                                # padded output dim
    Mb = min(block_m, _round_up(B, 8))   # batch rows per grid step
    M = _round_up(B, Mb)
    Nb = min(block_n, N)                 # output columns per grid step

    # One-time HBM-side weight prep: transpose into [K, N] layout and pad, so
    # the kernel never transposes.  (In a real model do this once at init.)
    w1t = jnp.zeros((K, H), cdt).at[:dim_in, :dim_out].set(
        w1.T.astype(compute_dtype))
    w2t = jnp.zeros((H, N), cdt).at[:dim_out, :dim_out].set(
        w2.T.astype(compute_dtype))
    xp = jnp.zeros((M, K), cdt).at[:B, :dim_in].set(
        features.astype(compute_dtype))

    grid = (M // Mb, N // Nb)

    # VMEM budget: double-buffered inputs/outputs + wh scratch, with headroom.
    est = (2 * (Mb * K + K * H + H * Nb) * cdt.itemsize
           + 2 * Mb * Nb * jnp.dtype(out_dtype).itemsize
           + Mb * H * cdt.itemsize)
    vmem_limit = int(min(64 * 1024 * 1024, max(32 * 1024 * 1024, 2 * est)))

    out = pl.pallas_call(
        mlp_norm_kernel,
        out_shape=jax.ShapeDtypeStruct((M, N), out_dtype),
        grid=grid,
        in_specs=[
            pl.BlockSpec((Mb, K), lambda i, j: (i, 0)),   # activation tile
            pl.BlockSpec((K, H), lambda i, j: (0, 0)),    # W1^T, VMEM-resident
            pl.BlockSpec((H, Nb), lambda i, j: (0, j)),   # W2^T column tile
        ],
        out_specs=pl.BlockSpec((Mb, Nb), lambda i, j: (i, j)),
        scratch_shapes=[pltpu.VMEM((Mb, H), cdt)],        # hidden activations
        compiler_params=pltpu.CompilerParams(
            # Batch tiles are independent (megacore-shardable on v7x);
            # the j axis carries the wh scratch, so it stays "arbitrary".
            dimension_semantics=("parallel", "arbitrary"),
            vmem_limit_bytes=vmem_limit,
        ),
    )(xp, w1t, w2t)

    return out[:B, :dim_out]


def mlp_norm_reference(features, w1, w2):
    wh = features @ w1.T
    wh = jnp.maximum(wh, 0.0)
    return wh @ w2.T


if __name__ == "__main__":
    # Small shapes consistent with the module: features [B, dim_in].
    B, dim_in, dim_out = 8, 32, 16

    key = jax.random.PRNGKey(0)
    k_x, k_w1, k_w2 = jax.random.split(key, 3)

    features = jax.random.normal(k_x, (B, dim_in), dtype=jnp.float32)
    # init.normal_(W, std=0.001)
    w1 = 0.001 * jax.random.normal(k_w1, (dim_out, dim_in), dtype=jnp.float32)
    w2 = 0.001 * jax.random.normal(k_w2, (dim_out, dim_out), dtype=jnp.float32)

    ref = mlp_norm_reference(features, w1, w2)

    # f32 compute path: checks padding / tiling logic exactly.
    out_f32 = jax.block_until_ready(
        mlp_norm_forward(features, w1, w2, compute_dtype=jnp.float32))
    assert out_f32.shape == (B, dim_out)
    assert jnp.allclose(out_f32, ref, atol=1e-6, rtol=1e-5)

    # bf16 compute path (default): f32 accumulation, looser tolerance.
    out_bf16 = jax.block_until_ready(mlp_norm_forward(features, w1, w2))
    assert out_bf16.shape == (B, dim_out)
    assert jnp.allclose(out_bf16, ref, atol=2e-6, rtol=5e-2)

    print("KERNEL_OK")
</pallas_src>

<mosaic_0001>
module attributes {stable_mosaic.version = 11 : i64} {
  func.func @mlp_norm_kernel(%arg0: i32, %arg1: i32, %arg2: memref<8x128xf32, #tpu.memory_space<vmem>>, %arg3: memref<128x128xf32, #tpu.memory_space<vmem>>, %arg4: memref<128x128xf32, #tpu.memory_space<vmem>>, %arg5: memref<8x128xf32, #tpu.memory_space<vmem>>, %arg6: memref<8x128xf32, #tpu.memory_space<vmem>>) attributes {dimension_semantics = [#tpu.dimension_semantics<parallel>, #tpu.dimension_semantics<arbitrary>], iteration_bounds = array<i64: 1, 1>, scalar_prefetch = 0 : i64, scratch_operands = 1 : i64, tpu.core_type = #tpu.core_type<tc>, window_params = [{transform_indices = @transform_0, window_bounds = array<i64: 8, 128>}, {pipeline_mode = #tpu.pipeline_mode<synchronous>, transform_indices = @transform_1, window_bounds = array<i64: 128, 128>}, {transform_indices = @transform_2, window_bounds = array<i64: 128, 128>}, {transform_indices = @transform_3, window_bounds = array<i64: 8, 128>}]} {
    %c0_i32 = arith.constant 0 : i32
    %0 = arith.cmpi eq, %arg1, %c0_i32 : i32
    %1 = arith.extui %0 : i1 to i32
    %c0_i32_0 = arith.constant 0 : i32
    %2 = arith.cmpi ne, %1, %c0_i32_0 : i32
    scf.if %2 {
      %c0_6 = arith.constant 0 : index
      %c0_7 = arith.constant 0 : index
      %7 = vector.load %arg2[%c0_6, %c0_7] : memref<8x128xf32, #tpu.memory_space<vmem>>, vector<8x128xf32>
      %c0_8 = arith.constant 0 : index
      %c0_9 = arith.constant 0 : index
      %8 = vector.load %arg3[%c0_8, %c0_9] : memref<128x128xf32, #tpu.memory_space<vmem>>, vector<128x128xf32>
      %cst_10 = arith.constant dense<0.000000e+00> : vector<8x128xf32>
      %9 = tpu.matmul %7, %8, %cst_10 {dimension_numbers = #tpu.dot_dimension_numbers<[1], [0], [0], [1], [0, 0, 1, 1], [], []>} : vector<8x128xf32>, vector<128x128xf32>, vector<8x128xf32> -> vector<8x128xf32>
      %cst_11 = arith.constant 0.000000e+00 : f32
      %10 = vector.broadcast %cst_11 : f32 to vector<8x128xf32>
      %11 = arith.maximumf %9, %10 : vector<8x128xf32>
      %c0_12 = arith.constant 0 : index
      %c0_13 = arith.constant 0 : index
      %12 = vector.load %arg6[%c0_12, %c0_13] : memref<8x128xf32, #tpu.memory_space<vmem>>, vector<8x128xf32>
      tpu.vector_store %arg6[%c0_12, %c0_13], %11 {strides = array<i32>} : memref<8x128xf32, #tpu.memory_space<vmem>>, vector<8x128xf32>,
    } else {
    }
    %c0 = arith.constant 0 : index
    %c0_1 = arith.constant 0 : index
    %3 = vector.load %arg6[%c0, %c0_1] : memref<8x128xf32, #tpu.memory_space<vmem>>, vector<8x128xf32>
    %c0_2 = arith.constant 0 : index
    %c0_3 = arith.constant 0 : index
    %4 = vector.load %arg4[%c0_2, %c0_3] : memref<128x128xf32, #tpu.memory_space<vmem>>, vector<128x128xf32>
    %cst = arith.constant dense<0.000000e+00> : vector<8x128xf32>
    %5 = tpu.matmul %3, %4, %cst {dimension_numbers = #tpu.dot_dimension_numbers<[1], [0], [0], [1], [0, 0, 1, 1], [], []>} : vector<8x128xf32>, vector<128x128xf32>, vector<8x128xf32> -> vector<8x128xf32>
    %c0_4 = arith.constant 0 : index
    %c0_5 = arith.constant 0 : index
    %6 = vector.load %arg5[%c0_4, %c0_5] : memref<8x128xf32, #tpu.memory_space<vmem>>, vector<8x128xf32>
    tpu.vector_store %arg5[%c0_4, %c0_5], %5 {strides = array<i32>} : memref<8x128xf32, #tpu.memory_space<vmem>>, vector<8x128xf32>,
    return
  }
  func.func @transform_0(%arg0: i32, %arg1: i32) -> (i32, i32) {
    %c0_i32 = arith.constant 0 : i32
    %c0_i32_0 = arith.constant 0 : i32
    return %arg0, %c0_i32 : i32, i32
  }
  func.func @transform_1(%arg0: i32, %arg1: i32) -> (i32, i32) {
    %c0_i32 = arith.constant 0 : i32
    %c0_i32_0 = arith.constant 0 : i32
    %c0_i32_1 = arith.constant 0 : i32
    return %c0_i32, %c0_i32_0 : i32, i32
  }
  func.func @transform_2(%arg0: i32, %arg1: i32) -> (i32, i32) {
    %c0_i32 = arith.constant 0 : i32
    %c0_i32_0 = arith.constant 0 : i32
    return %c0_i32, %arg1 : i32, i32
  }
  func.func @transform_3(%arg0: i32, %arg1: i32) -> (i32, i32) {
    %c0_i32 = arith.constant 0 : i32
    return %arg0, %arg1 : i32, i32
  }
}

</mosaic_0001>

<llo_original>
// kernel: tpu_custom_call.1
$region0: #{tpu_custom_call.1}
  #allocation0 [shape = 'u32[]', space=smem, size = 0x4, offset = 0x4, fixed_abs, tag = 'smem constant byte address 0x4 - core index']
  #allocation1 [shape = 'u32[144,128]{1,0:T(1,128)}', space=vmem, size = 0x12000, scoped, tag = 'internal scratch']
  #allocation2 [shape = 'f32[8,128]{1,0:T(8,128)}', space=vmem, size = 0x1000, scoped, tag = 'scratch operand']
  %s0 = inlined_call_operand.hbm [shape: f32[8,128], index: 0, kind: input, shape index: {}]
  %s1 = inlined_call_operand.hbm [shape: f32[128,128], index: 1, kind: input, shape index: {}]
  %s2 = inlined_call_operand.hbm [shape: f32[128,128], index: 2, kind: input, shape index: {}]
  %s3 = inlined_call_operand.hbm [shape: f32[8,128], index: 3, kind: output, shape index: {}]
  %s4 = sld [smem:[#allocation0]]
  $region38: #{tpu_custom_call.1} parent=0
    _
  %s6 = ssub.s32 1, %s4
  %s7 = scalar_select 0, %s6, %s4
  $region1: #{tpu_custom_call.1} parent=0
    #allocation3 [shape = 'u8[4096]{0}', space=vmem, size = 0x1000, scoped, tag = 'input window, operand 0, single buffered']
    #allocation4 [shape = 's32[1]{0}', space=sflag, size = 0x4, scoped, tag = 'scoped memory for tpu_custom_call.1']
    #allocation5 [shape = 's32[1]{0}', space=sflag, size = 0x4, scoped, tag = 'scoped memory for tpu_custom_call.1']
    #allocation6 [shape = 'u8[65536]{0}', space=vmem, size = 0x10000, scoped, tag = 'input window, operand 1, single buffered']
    #allocation7 [shape = 's32[1]{0}', space=sflag, size = 0x4, scoped, tag = 'scoped memory for tpu_custom_call.1']
    #allocation8 [shape = 'u8[65536]{0}', space=vmem, size = 0x10000, scoped, tag = 'input window, operand 2, single buffered']
    #allocation9 [shape = 'u8[4096]{0}', space=vmem, size = 0x1000, scoped, tag = 'output window, operand 0, single buffered']
    %8 = vsyncpa [#allocation4], 0
    %9 = vsyncpa [#allocation7], 0
    %10 = vsyncpa [#allocation5], 0
    // Predicated region
    $region2: #{tpu_custom_call.1} parent=1 // pred_check
      _
    $region3: #{tpu_custom_call.1} parent=1 // pred_check_branch
      %12 = sbr.rel (0) target = $region5
    $region4: #{tpu_custom_call.1} parent=1 // pred_region
      %s14 = ssub.s32 128, 128
      %15 = vsyncadd [#allocation4], %s14
      %s17 = sshll.u32 [#allocation3], 4
      %s18 = int_to_ptr.vmem [resolvable:$true] %s17
      %20 = dma.hbm_to_vmem [thread:$0]  %s0, 128, %s18, [#allocation4]
    $region5: #{tpu_custom_call.1} parent=1 // pred_fallthru
      _
    // Predicated region
    $region6: #{tpu_custom_call.1} parent=1 // pred_check
      _
    $region7: #{tpu_custom_call.1} parent=1 // pred_check_branch
      %22 = sbr.rel (0) target = $region9
    $region8: #{tpu_custom_call.1} parent=1 // pred_region
      %s24 = ssub.s32 2048, 2048
      %25 = vsyncadd [#allocation7], %s24
      %s26 = sshll.u32 [#allocation6], 4
      %s27 = int_to_ptr.vmem [resolvable:$true] %s26
      %32 = dma.hbm_to_vmem [thread:$0]  %s1, 2048, %s27, [#allocation7], 128, 128, 8
    $region9: #{tpu_custom_call.1} parent=1 // pred_fallthru
      _
    // Predicated region
    $region10: #{tpu_custom_call.1} parent=1 // pred_check
      _
    $region11: #{tpu_custom_call.1} parent=1 // pred_check_branch
      %34 = sbr.rel (0) target = $region13
    $region12: #{tpu_custom_call.1} parent=1 // pred_region
      %s36 = ssub.s32 2048, 2048
      %37 = vsyncadd [#allocation7], %s36
      %s38 = sshll.u32 [#allocation8], 4
      %s39 = int_to_ptr.vmem [resolvable:$true] %s38
      %44 = dma.hbm_to_vmem [thread:$0]  %s2, 2048, %s39, [#allocation7], 128, 128, 8
    $region13: #{tpu_custom_call.1} parent=1 // pred_fallthru
      _
    // Predicated region
    $region14: #{tpu_custom_call.1} parent=1 // pred_check
      _
    $region15: #{tpu_custom_call.1} parent=1 // pred_check_branch
      %46 = sbr.rel (0) target = $region17
    $region16: #{tpu_custom_call.1} parent=1 // pred_region
      %47 = dma.done [#allocation4], 128
    $region17: #{tpu_custom_call.1} parent=1 // pred_fallthru
      _
    // Predicated region
    $region18: #{tpu_custom_call.1} parent=1 // pred_check
      _
    $region19: #{tpu_custom_call.1} parent=1 // pred_check_branch
      %49 = sbr.rel (0) target = $region21
    $region20: #{tpu_custom_call.1} parent=1 // pred_region
      %50 = dma.done [#allocation7], 2048
    $region21: #{tpu_custom_call.1} parent=1 // pred_fallthru
      _
    // Predicated region
    $region22: #{tpu_custom_call.1} parent=1 // pred_check
      _
    $region23: #{tpu_custom_call.1} parent=1 // pred_check_branch
      %52 = sbr.rel (0) target = $region25
    $region24: #{tpu_custom_call.1} parent=1 // pred_region
      %53 = dma.done [#allocation7], 2048
    $region25: #{tpu_custom_call.1} parent=1 // pred_fallthru
      _
    %p54 = scmp.eq.s32.totalorder 0, 0
    // Predicated region
    $region26: #{tpu_custom_call.1} parent=1 // pred_check
      %p55 = pneg %p54
    $region27: #{tpu_custom_call.1} parent=1 // pred_check_branch
      %57 = sbr.rel (%p55) target = $region29
    $region28: #{tpu_custom_call.1} parent=1 // pred_region
      %v58 = vld [vmem:[#allocation3] sm:$0xff]
      %v59 = vld [vmem:[#allocation6] sm:$0xff]
      %v60 = vld [vmem:[#allocation6 + $0x8] sm:$0xff]
      %v61 = vld [vmem:[#allocation6 + $0x10] sm:$0xff]
      %v62 = vld [vmem:[#allocation6 + $0x18] sm:$0xff]
      %v63 = vld [vmem:[#allocation6 + $0x20] sm:$0xff]
      %v64 = vld [vmem:[#allocation6 + $0x28] sm:$0xff]
      %v65 = vld [vmem:[#allocation6 + $0x30] sm:$0xff]
      %v66 = vld [vmem:[#allocation6 + $0x38] sm:$0xff]
      %v67 = vld [vmem:[#allocation6 + $0x40] sm:$0xff]
      %v68 = vld [vmem:[#allocation6 + $0x48] sm:$0xff]
      %v69 = vld [vmem:[#allocation6 + $0x50] sm:$0xff]
      %v70 = vld [vmem:[#allocation6 + $0x58] sm:$0xff]
      %v71 = vld [vmem:[#allocation6 + $0x60] sm:$0xff]
      %v72 = vld [vmem:[#allocation6 + $0x68] sm:$0xff]
      %v73 = vld [vmem:[#allocation6 + $0x70] sm:$0xff]
      %v74 = vld [vmem:[#allocation6 + $0x78] sm:$0xff]
      %75 = vmatprep.subr.mxu0 0.0
      %76 = vmatpush1.msra.mxu0 %v59
      %77 = vmatprep.subr.mxu0 0.0
      %78 = vmatpush1.msra.mxu0 %v60
      %79 = vmatprep.subr.mxu0 0.0
      %80 = vmatpush1.msra.mxu0 %v61
      %81 = vmatprep.subr.mxu0 0.0
      %82 = vmatpush1.msra.mxu0 %v62
      %83 = vmatprep.subr.mxu0 0.0
      %84 = vmatpush1.msra.mxu0 %v63
      %85 = vmatprep.subr.mxu0 0.0
      %86 = vmatpush1.msra.mxu0 %v64
      %87 = vmatprep.subr.mxu0 0.0
      %88 = vmatpush1.msra.mxu0 %v65
      %89 = vmatprep.subr.mxu0 0.0
      %90 = vmatpush1.msra.mxu0 %v66
      %91 = vmatprep.subr.mxu0 0.0
      %92 = vmatpush1.msra.mxu0 %v67
      %93 = vmatprep.subr.mxu0 0.0
      %94 = vmatpush1.msra.mxu0 %v68
      %95 = vmatprep.subr.mxu0 0.0
      %96 = vmatpush1.msra.mxu0 %v69
      %97 = vmatprep.subr.mxu0 0.0
      %98 = vmatpush1.msra.mxu0 %v70
      %99 = vmatprep.subr.mxu0 0.0
      %100 = vmatpush1.msra.mxu0 %v71
      %101 = vmatprep.subr.mxu0 0.0
      %102 = vmatpush1.msra.mxu0 %v72
      %103 = vmatprep.subr.mxu0 0.0
      %104 = vmatpush1.msra.mxu0 %v73
      %105 = vmatprep.subr.mxu0 0.0
      %106 = vmatpush1.msra.mxu0 %v74
      %107 = vmatprep.subr.mxu0 0.0
      %108 = vmatpush1.msra.mxu0 0.0
      %109 = vmatprep.subr.mxu0 0.0
      %110 = vmatpush1.msra.mxu0 0.0
      %111 = vmatprep.subr.mxu0 0.0
      %112 = vmatpush1.msra.mxu0 0.0
      %113 = vmatprep.subr.mxu0 0.0
      %114 = vmatpush1.msra.mxu0 0.0
      %115 = vmatprep.subr.mxu0 0.0
      %116 = vmatpush1.msra.mxu0 0.0
      %117 = vmatprep.subr.mxu0 0.0
      %118 = vmatpush1.msra.mxu0 0.0
      %119 = vmatprep.subr.mxu0 0.0
      %120 = vmatpush1.msra.mxu0 0.0
      %121 = vmatprep.subr.mxu0 0.0
      %122 = vmatpush1.msra.mxu0 0.0
      %123 = vmatprep.subr.mxu0 0.0
      %124 = vmatpush1.msra.mxu0 0.0
      %125 = vmatprep.subr.mxu0 0.0
      %126 = vmatpush1.msra.mxu0 0.0
      %127 = vmatprep.subr.mxu0 0.0
      %128 = vmatpush1.msra.mxu0 0.0
      %129 = vmatprep.subr.mxu0 0.0
      %130 = vmatpush1.msra.mxu0 0.0
      %131 = vmatprep.subr.mxu0 0.0
      %132 = vmatpush1.msra.mxu0 0.0
      %133 = vmatprep.subr.mxu0 0.0
      %134 = vmatpush1.msra.mxu0 0.0
      %135 = vmatprep.subr.mxu0 0.0
      %136 = vmatpush1.msra.mxu0 0.0
      %137 = vmatprep.subr.mxu0 0.0
      %138 = vmatpush1.msra.mxu0 0.0
      %139 = vmatprep.mubr.f32.mxu0 0.0
      %140 = vmatmul.mubr.f32.gmra.mrb[0].mxu0 %v58
      %v141 = vpop.f32.mrb[0].mxu0
      %v142 = vadd.f32 0.0, %v141
      %v143 = vpop.f32.mrb[0].mxu0
      %144 = vdwg.mxu0
      %v145 = vmax.f32 %v142, 0.0
      %146 = vst [vmem:[#allocation2] sm:$0xff] %v145
    $region29: #{tpu_custom_call.1} parent=1 // pred_fallthru
      _
    %v147 = vld [vmem:[#allocation2] sm:$0xff]
    %v148 = vld [vmem:[#allocation8] sm:$0xff]
    %v149 = vld [vmem:[#allocation8 + $0x8] sm:$0xff]
    %v150 = vld [vmem:[#allocation8 + $0x10] sm:$0xff]
    %v151 = vld [vmem:[#allocation8 + $0x18] sm:$0xff]
    %v152 = vld [vmem:[#allocation8 + $0x20] sm:$0xff]
    %v153 = vld [vmem:[#allocation8 + $0x28] sm:$0xff]
    %v154 = vld [vmem:[#allocation8 + $0x30] sm:$0xff]
    %v155 = vld [vmem:[#allocation8 + $0x38] sm:$0xff]
    %v156 = vld [vmem:[#allocation8 + $0x40] sm:$0xff]
    %v157 = vld [vmem:[#allocation8 + $0x48] sm:$0xff]
    %v158 = vld [vmem:[#allocation8 + $0x50] sm:$0xff]
    %v159 = vld [vmem:[#allocation8 + $0x58] sm:$0xff]
    %v160 = vld [vmem:[#allocation8 + $0x60] sm:$0xff]
    %v161 = vld [vmem:[#allocation8 + $0x68] sm:$0xff]
    %v162 = vld [vmem:[#allocation8 + $0x70] sm:$0xff]
    %v163 = vld [vmem:[#allocation8 + $0x78] sm:$0xff]
    %164 = vmatprep.subr.mxu0 0.0
    %165 = vmatpush1.msra.mxu0 %v148
    %166 = vmatprep.subr.mxu0 0.0
    %167 = vmatpush1.msra.mxu0 %v149
    %168 = vmatprep.subr.mxu0 0.0
    %169 = vmatpush1.msra.mxu0 %v150
    %170 = vmatprep.subr.mxu0 0.0
    %171 = vmatpush1.msra.mxu0 %v151
    %172 = vmatprep.subr.mxu0 0.0
    %173 = vmatpush1.msra.mxu0 %v152
    %174 = vmatprep.subr.mxu0 0.0
    %175 = vmatpush1.msra.mxu0 %v153
    %176 = vmatprep.subr.mxu0 0.0
    %177 = vmatpush1.msra.mxu0 %v154
    %178 = vmatprep.subr.mxu0 0.0
    %179 = vmatpush1.msra.mxu0 %v155
    %180 = vmatprep.subr.mxu0 0.0
    %181 = vmatpush1.msra.mxu0 %v156
    %182 = vmatprep.subr.mxu0 0.0
    %183 = vmatpush1.msra.mxu0 %v157
    %184 = vmatprep.subr.mxu0 0.0
    %185 = vmatpush1.msra.mxu0 %v158
    %186 = vmatprep.subr.mxu0 0.0
    %187 = vmatpush1.msra.mxu0 %v159
    %188 = vmatprep.subr.mxu0 0.0
    %189 = vmatpush1.msra.mxu0 %v160
    %190 = vmatprep.subr.mxu0 0.0
    %191 = vmatpush1.msra.mxu0 %v161
    %192 = vmatprep.subr.mxu0 0.0
    %193 = vmatpush1.msra.mxu0 %v162
    %194 = vmatprep.subr.mxu0 0.0
    %195 = vmatpush1.msra.mxu0 %v163
    %196 = vmatprep.subr.mxu0 0.0
    %197 = vmatpush1.msra.mxu0 0.0
    %198 = vmatprep.subr.mxu0 0.0
    %199 = vmatpush1.msra.mxu0 0.0
    %200 = vmatprep.subr.mxu0 0.0
    %201 = vmatpush1.msra.mxu0 0.0
    %202 = vmatprep.subr.mxu0 0.0
    %203 = vmatpush1.msra.mxu0 0.0
    %204 = vmatprep.subr.mxu0 0.0
    %205 = vmatpush1.msra.mxu0 0.0
    %206 = vmatprep.subr.mxu0 0.0
    %207 = vmatpush1.msra.mxu0 0.0
    %208 = vmatprep.subr.mxu0 0.0
    %209 = vmatpush1.msra.mxu0 0.0
    %210 = vmatprep.subr.mxu0 0.0
    %211 = vmatpush1.msra.mxu0 0.0
    %212 = vmatprep.subr.mxu0 0.0
    %213 = vmatpush1.msra.mxu0 0.0
    %214 = vmatprep.subr.mxu0 0.0
    %215 = vmatpush1.msra.mxu0 0.0
    %216 = vmatprep.subr.mxu0 0.0
    %217 = vmatpush1.msra.mxu0 0.0
    %218 = vmatprep.subr.mxu0 0.0
    %219 = vmatpush1.msra.mxu0 0.0
    %220 = vmatprep.subr.mxu0 0.0
    %221 = vmatpush1.msra.mxu0 0.0
    %222 = vmatprep.subr.mxu0 0.0
    %223 = vmatpush1.msra.mxu0 0.0
    %224 = vmatprep.subr.mxu0 0.0
    %225 = vmatpush1.msra.mxu0 0.0
    %226 = vmatprep.subr.mxu0 0.0
    %227 = vmatpush1.msra.mxu0 0.0
    %228 = vmatprep.mubr.f32.mxu0 0.0
    %229 = vmatmul.mubr.f32.gmra.mrb[0].mxu0 %v147
    %v230 = vpop.f32.mrb[0].mxu0
    %v231 = vadd.f32 0.0, %v230
    %v232 = vpop.f32.mrb[0].mxu0
    %233 = vdwg.mxu0
    %234 = vst [vmem:[#allocation9] sm:$0xff] %v231
    // Predicated region
    $region30: #{tpu_custom_call.1} parent=1 // pred_check
      _
    $region31: #{tpu_custom_call.1} parent=1 // pred_check_branch
      %236 = sbr.rel (0) target = $region33
    $region32: #{tpu_custom_call.1} parent=1 // pred_region
      %s238 = ssub.s32 128, 128
      %239 = vsyncadd [#allocation5], %s238
      %s241 = sshll.u32 [#allocation9], 4
      %s242 = int_to_ptr.vmem [resolvable:$true] %s241
      %244 = dma.vmem_to_hbm [thread:$0]  %s242, 128, %s3, [#allocation5]
    $region33: #{tpu_custom_call.1} parent=1 // pred_fallthru
      _
    // Predicated region
    $region34: #{tpu_custom_call.1} parent=1 // pred_check
      _
    $region35: #{tpu_custom_call.1} parent=1 // pred_check_branch
      %246 = sbr.rel (0) target = $region37
    $region36: #{tpu_custom_call.1} parent=1 // pred_region
      %247 = dma.done [#allocation5], 128
    $region37: #{tpu_custom_call.1} parent=1 // pred_fallthru
      _
    %248 = vsyncpa [#allocation4], 1
    %249 = vsyncpa [#allocation7], 1
    %250 = vsyncpa [#allocation5], 1

</llo_original>
